<compile_context>
chip_gen: v5e
topology: v5e:2x2
jax: 0.10.0
libtpu: 0.0.40
codegen_flags: <defaults>
</compile_context>

<pallas_src>
import jax
import jax.numpy as jnp
from jax.experimental import pallas as pl
from jax.experimental.pallas import tpu as pltpu

NUM_CLASSES = 26   # the module hard-codes 26 alpha parameters
_CPAD = 32         # classes padded 26 -> 32 (sublane-friendly, 8-divisible)
_NEG = -1e30       # logit fill for padded class rows: exp() underflows to 0,
                   # stays finite (avoids 0 * -inf = NaN in target * log_p)


def _exp_log_loss_kernel(x_ref, t_ref, out_ref, acc_ref):
    """Grid = (num_splits [parallel], steps [reduction]).

    x_ref / t_ref are class-major (CPAD=32, tn) tiles: classes on sublanes,
    samples on lanes, so every vreg lane is live.
    """
    i = pl.program_id(1)  # reduction step within this split

    @pl.when(i == 0)
    def _():
        acc_ref[...] = jnp.zeros_like(acc_ref)

    x = x_ref[...].astype(jnp.float32)  # (32, tn)
    t = t_ref[...].astype(jnp.float32)  # (32, tn)

    # Numerically stable log_softmax over the class (sublane) axis.
    m = jnp.max(x, axis=0, keepdims=True)                       # (1, tn)
    z = x - m
    lse = jnp.log(jnp.sum(jnp.exp(z), axis=0, keepdims=True))   # (1, tn)
    log_p = z - lse                                             # (32, tn)

    # Full-tile vector accumulator: one VPU multiply-add per step; all
    # reductions deferred to the finalize below.
    acc_ref[...] += t * log_p

    @pl.when(i == pl.num_programs(1) - 1)
    def _():
        # One lane reduction per split: per-class sums over this split's samples.
        col = jnp.sum(acc_ref[...], axis=1, keepdims=True)      # (32, 1)
        out_ref[...] = col[None]                                # (1, 32, 1)


def _num_tensorcores():
    """2 on v7x (2 TensorCores / chip), 1 on single-TC v5e / v6e."""
    try:
        kind = (getattr(jax.devices()[0], "device_kind", "") or "").lower()
    except Exception:
        return 1
    return 2 if "v7" in kind else 1


def exp_log_loss(x, target, alpha, *, batch_tile=16384, num_splits=None):
    """Pallas TPU implementation of ExpLogLoss.forward.

    x, target : [N, C] float arrays (f32 or bf16)
    alpha     : [C] float array (concatenation of the 26 scalar parameters)
    batch_tile: samples per grid step (lane-axis tile; primary sweep knob)
    """
    N, C = x.shape
    assert target.shape == (N, C)
    assert alpha.shape == (C,)
    assert C <= _CPAD

    n_split = _num_tensorcores() if num_splits is None else max(1, int(num_splits))

    # ---- tile selection (lane axis = samples) ----
    # Worst-case per-lane-column VMEM: 2 inputs x 2 pipeline buffers + f32
    # accumulator, all counted as f32.  Cap the tile so this stays <= ~24 MiB
    # per TensorCore (headroom on v7x's 64 MiB physical VMEM).
    bytes_per_lane_col = 5 * _CPAD * 4
    max_tn = ((24 << 20) // bytes_per_lane_col) // 128 * 128
    rows_per_split = -(-N // n_split)
    tn = min(int(batch_tile), -(-rows_per_split // 128) * 128, max_tn)
    tn = max(128, (tn // 128) * 128)

    chunk = n_split * tn
    steps = -(-N // chunk)
    n_pad = steps * chunk

    # ---- class-major, lane-dense layout: [N, C] -> [CPAD, n_pad] ----
    # Padded class rows / padded sample columns get _NEG logits (drop out of
    # the LSE, stay finite) and zero targets (contribute exactly 0).
    # TODO(synk): if the upstream producer can emit class-major activations
    # directly, drop this wrapper transpose (one extra XLA pass over HBM).
    xt = jnp.pad(jnp.transpose(x), ((0, _CPAD - C), (0, n_pad - N)),
                 constant_values=_NEG)
    tt = jnp.pad(jnp.transpose(target), ((0, _CPAD - C), (0, n_pad - N)))

    vmem_need = bytes_per_lane_col * tn
    # v5e's scoped-VMEM default is only 16 MiB; set an explicit limit with
    # headroom, capped at 48 MiB (below v7x's 64 MiB physical per TC).
    vmem_limit = int(min(max(vmem_need + (8 << 20), 16 << 20), 48 << 20))

    out = pl.pallas_call(
        _exp_log_loss_kernel,
        out_shape=jax.ShapeDtypeStruct((n_split, _CPAD, 1), jnp.float32),
        grid_spec=pltpu.PrefetchScalarGridSpec(
            num_scalar_prefetch=0,
            grid=(n_split, steps),
            in_specs=[
                pl.BlockSpec((_CPAD, tn), lambda s, i: (0, s * steps + i)),  # logits
                pl.BlockSpec((_CPAD, tn), lambda s, i: (0, s * steps + i)),  # targets
            ],
            # Per-split per-class partial sums; resident across the reduction axis.
            out_specs=pl.BlockSpec((1, _CPAD, 1), lambda s, i: (s, 0, 0)),
            scratch_shapes=[pltpu.VMEM((_CPAD, tn), jnp.float32)],
        ),
        compiler_params=pltpu.CompilerParams(
            # Leading split axis sharded across TensorCores on v7x; n_split==1
            # (a no-op) on single-TC v5e / v6e.
            # TODO(synk): verify in xprof that both v7x TCs are busy; if not,
            # switch this axis to pltpu.CORE_PARALLEL.
            dimension_semantics=("parallel", "arbitrary"),
            vmem_limit_bytes=vmem_limit,
        ),
    )(xt, tt)

    # Finalize in JAX: combine per-split per-class partials, apply exp(-alpha)
    # once, divide by the TRUE batch size N, negate.  Padded class rows are
    # exactly zero (zero targets), so [:C] is just bookkeeping.
    per_class = jnp.sum(out.reshape(n_split, _CPAD), axis=0)[:C]
    exp_neg_alpha = jnp.exp(-alpha.astype(jnp.float32))
    return -jnp.sum(per_class * exp_neg_alpha) / jnp.float32(N)


def exp_log_loss_ref(x, target, alpha):
    """Pure-JAX reference matching the PyTorch forward exactly."""
    log_p = jax.nn.log_softmax(x.astype(jnp.float32), axis=1)
    w = target.astype(jnp.float32) * log_p * jnp.exp(-alpha.astype(jnp.float32))
    return -jnp.mean(jnp.sum(w, axis=1))


if __name__ == "__main__":
    key = jax.random.PRNGKey(0)
    k1, k2, k3, k4 = jax.random.split(key, 4)

    C = NUM_CLASSES
    ALPHA_INIT = 1.0  # deterministic init: alpha * ones(1) per parameter
    alpha = ALPHA_INIT * jnp.ones((C,), dtype=jnp.float32)

    # Small batch, not a multiple of the 128-lane tile -> exercises the
    # class padding (26->32) and sample-column zero-padding paths.
    N = 20
    x = jax.random.normal(k1, (N, C), dtype=jnp.float32)
    target = jax.nn.softmax(jax.random.normal(k2, (N, C), dtype=jnp.float32), axis=1)
    loss = jax.block_until_ready(exp_log_loss(x, target, alpha))
    ref = jax.block_until_ready(exp_log_loss_ref(x, target, alpha))
    assert jnp.allclose(loss, ref, atol=1e-5, rtol=1e-5), (loss, ref)

    # Larger batch with a small tile -> multiple reduction steps per split,
    # plus bf16 inputs (cast to f32 happens inside the kernel).
    N2 = 1000
    x2 = jax.random.normal(k3, (N2, C), dtype=jnp.float32).astype(jnp.bfloat16)
    t2 = jax.nn.softmax(jax.random.normal(k4, (N2, C), dtype=jnp.float32), axis=1
                        ).astype(jnp.bfloat16)
    loss2 = jax.block_until_ready(
        exp_log_loss(x2, t2, alpha, batch_tile=256, num_splits=1))
    ref2 = jax.block_until_ready(exp_log_loss_ref(x2, t2, alpha))
    assert jnp.allclose(loss2, ref2, atol=1e-4, rtol=1e-4), (loss2, ref2)

    print("KERNEL_OK")
</pallas_src>

<mosaic_0001>
module attributes {stable_mosaic.version = 11 : i64} {
  func.func @_exp_log_loss_kernel(%arg0: i32, %arg1: i32, %arg2: memref<32x128xf32, #tpu.memory_space<vmem>>, %arg3: memref<32x128xf32, #tpu.memory_space<vmem>>, %arg4: memref<1x32x1xf32, #tpu.memory_space<vmem>>, %arg5: memref<32x128xf32, #tpu.memory_space<vmem>>) attributes {dimension_semantics = [#tpu.dimension_semantics<parallel>, #tpu.dimension_semantics<arbitrary>], iteration_bounds = array<i64: 1, 1>, scalar_prefetch = 0 : i64, scratch_operands = 1 : i64, tpu.core_type = #tpu.core_type<tc>, window_params = [{transform_indices = @transform_0, window_bounds = array<i64: 32, 128>}, {transform_indices = @transform_1, window_bounds = array<i64: 32, 128>}, {transform_indices = @transform_2, window_bounds = array<i64: 1, 32, 1>}]} {
    %c0_i32 = arith.constant 0 : i32
    %0 = arith.cmpi eq, %arg1, %c0_i32 : i32
    %1 = arith.extui %0 : i1 to i32
    %c0_i32_0 = arith.constant 0 : i32
    %2 = arith.cmpi ne, %1, %c0_i32_0 : i32
    scf.if %2 {
      %cst_11 = arith.constant 0.000000e+00 : f32
      %22 = vector.broadcast %cst_11 : f32 to vector<32x128xf32>
      %c0_12 = arith.constant 0 : index
      %c0_13 = arith.constant 0 : index
      %23 = vector.load %arg5[%c0_12, %c0_13] : memref<32x128xf32, #tpu.memory_space<vmem>>, vector<32x128xf32>
      tpu.vector_store %arg5[%c0_12, %c0_13], %22 {strides = array<i32>} : memref<32x128xf32, #tpu.memory_space<vmem>>, vector<32x128xf32>,
    } else {
    }
    %c0 = arith.constant 0 : index
    %c0_1 = arith.constant 0 : index
    %3 = vector.load %arg2[%c0, %c0_1] : memref<32x128xf32, #tpu.memory_space<vmem>>, vector<32x128xf32>
    %c0_2 = arith.constant 0 : index
    %c0_3 = arith.constant 0 : index
    %4 = vector.load %arg3[%c0_2, %c0_3] : memref<32x128xf32, #tpu.memory_space<vmem>>, vector<32x128xf32>
    %cst = arith.constant dense<0xFF800000> : vector<128xf32>
    %5 = vector.multi_reduction <maximumf>, %3, %cst [0] : vector<32x128xf32> to vector<128xf32>
    %6 = vector.shape_cast %5 : vector<128xf32> to vector<1x128xf32>
    %7 = vector.broadcast %6 : vector<1x128xf32> to vector<32x128xf32>
    %8 = arith.subf %3, %7 : vector<32x128xf32>
    %9 = math.exp %8 : vector<32x128xf32>
    %cst_4 = arith.constant dense<0.000000e+00> : vector<128xf32>
    %10 = vector.multi_reduction <add>, %9, %cst_4 [0] : vector<32x128xf32> to vector<128xf32>
    %11 = vector.shape_cast %10 : vector<128xf32> to vector<1x128xf32>
    %12 = math.log %11 : vector<1x128xf32>
    %13 = vector.broadcast %12 : vector<1x128xf32> to vector<32x128xf32>
    %14 = arith.subf %8, %13 : vector<32x128xf32>
    %c0_5 = arith.constant 0 : index
    %c0_6 = arith.constant 0 : index
    %15 = vector.load %arg5[%c0_5, %c0_6] : memref<32x128xf32, #tpu.memory_space<vmem>>, vector<32x128xf32>
    %16 = arith.mulf %4, %14 : vector<32x128xf32>
    %17 = arith.addf %15, %16 : vector<32x128xf32>
    %c0_7 = arith.constant 0 : index
    %c0_8 = arith.constant 0 : index
    %18 = vector.load %arg5[%c0_7, %c0_8] : memref<32x128xf32, #tpu.memory_space<vmem>>, vector<32x128xf32>
    tpu.vector_store %arg5[%c0_7, %c0_8], %17 {strides = array<i32>} : memref<32x128xf32, #tpu.memory_space<vmem>>, vector<32x128xf32>,
    %c0_i32_9 = arith.constant 0 : i32
    %19 = arith.cmpi eq, %arg1, %c0_i32_9 : i32
    %20 = arith.extui %19 : i1 to i32
    %c0_i32_10 = arith.constant 0 : i32
    %21 = arith.cmpi ne, %20, %c0_i32_10 : i32
    scf.if %21 {
      %c0_11 = arith.constant 0 : index
      %c0_12 = arith.constant 0 : index
      %22 = vector.load %arg5[%c0_11, %c0_12] : memref<32x128xf32, #tpu.memory_space<vmem>>, vector<32x128xf32>
      %cst_13 = arith.constant dense<0.000000e+00> : vector<32xf32>
      %23 = vector.multi_reduction <add>, %22, %cst_13 [1] : vector<32x128xf32> to vector<32xf32>
      %24 = vector.shape_cast %23 : vector<32xf32> to vector<32x1xf32>
      %25 = vector.shape_cast %24 : vector<32x1xf32> to vector<1x32x1xf32>
      %c0_14 = arith.constant 0 : index
      %c0_15 = arith.constant 0 : index
      %c0_16 = arith.constant 0 : index
      %26 = vector.load %arg4[%c0_14, %c0_15, %c0_16] : memref<1x32x1xf32, #tpu.memory_space<vmem>>, vector<1x32x1xf32>
      tpu.vector_store %arg4[%c0_14, %c0_15, %c0_16], %25 {strides = array<i32>} : memref<1x32x1xf32, #tpu.memory_space<vmem>>, vector<1x32x1xf32>,
    } else {
    }
    return
  }
  func.func @transform_0(%arg0: i32, %arg1: i32) -> (i32, i32) {
    %c1_i32 = arith.constant 1 : i32
    %0 = arith.muli %arg0, %c1_i32 : i32
    %1 = arith.addi %0, %arg1 : i32
    %c0_i32 = arith.constant 0 : i32
    %c0_i32_0 = arith.constant 0 : i32
    return %c0_i32, %1 : i32, i32
  }
  func.func @transform_1(%arg0: i32, %arg1: i32) -> (i32, i32) {
    %c1_i32 = arith.constant 1 : i32
    %0 = arith.muli %arg0, %c1_i32 : i32
    %1 = arith.addi %0, %arg1 : i32
    %c0_i32 = arith.constant 0 : i32
    %c0_i32_0 = arith.constant 0 : i32
    return %c0_i32, %1 : i32, i32
  }
  func.func @transform_2(%arg0: i32, %arg1: i32) -> (i32, i32, i32) {
    %c0_i32 = arith.constant 0 : i32
    %c0_i32_0 = arith.constant 0 : i32
    %c0_i32_1 = arith.constant 0 : i32
    return %arg0, %c0_i32, %c0_i32_0 : i32, i32, i32
  }
}

</mosaic_0001>

<llo_original>
// kernel: tpu_custom_call.1
$region0: #{tpu_custom_call.1}
  #allocation0 [shape = 'u32[]', space=smem, size = 0x4, offset = 0x4, fixed_abs, tag = 'smem constant byte address 0x4 - core index']
  #allocation1 [shape = 'u32[72,128]{1,0:T(1,128)}', space=vmem, size = 0x9000, scoped, tag = 'internal scratch']
  #allocation2 [shape = 'f32[32,128]{1,0:T(8,128)}', space=vmem, size = 0x4000, scoped, tag = 'scratch operand']
  %s0 = inlined_call_operand.hbm [shape: f32[32,128], index: 0, kind: input, shape index: {}]
  %s1 = inlined_call_operand.hbm [shape: f32[32,128], index: 1, kind: input, shape index: {}]
  %s2 = inlined_call_operand.vmem [shape: f32[1,32,1], index: 2, kind: output, shape index: {}]
  %s3 = sld [smem:[#allocation0]]
  $region34: #{tpu_custom_call.1} parent=0
    _
  %s5 = ssub.s32 1, %s3
  %s6 = scalar_select 0, %s5, %s3
  $region1: #{tpu_custom_call.1} parent=0
    #allocation3 [shape = 'u8[16384]{0}', space=vmem, size = 0x4000, scoped, tag = 'input window, operand 0, single buffered']
    #allocation4 [shape = 's32[1]{0}', space=sflag, size = 0x4, scoped, tag = 'scoped memory for tpu_custom_call.1']
    #allocation5 [shape = 'u8[16384]{0}', space=vmem, size = 0x4000, scoped, tag = 'input window, operand 1, single buffered']
    #allocation6 [shape = 's32[1]{0}', space=sflag, size = 0x4, scoped, tag = 'scoped memory for tpu_custom_call.1']
    %7 = vsyncpa [#allocation4], 0
    %8 = vsyncpa [#allocation6], 0
    // Predicated region
    $region2: #{tpu_custom_call.1} parent=1 // pred_check
      _
    $region3: #{tpu_custom_call.1} parent=1 // pred_check_branch
      %10 = sbr.rel (0) target = $region5
    $region4: #{tpu_custom_call.1} parent=1 // pred_region
      %s11 = sadd.s32 0, 0
      %13 = vsyncadd [#allocation4], 0
      %s14 = smul.addr %s11, 8
      %s15 = scalar_lea.hbm %s0, %s14
      %s16 = sshll.u32 %s15, 4
      %s17 = int_to_ptr.hbm [resolvable:$true] %s16
      %s18 = sshll.u32 [#allocation3], 4
      %s19 = int_to_ptr.vmem [resolvable:$true] %s18
      %24 = dma.hbm_to_vmem [thread:$0]  %s17, 512, %s19, [#allocation4], 128, 128, 8
    $region5: #{tpu_custom_call.1} parent=1 // pred_fallthru
      _
    // Predicated region
    $region6: #{tpu_custom_call.1} parent=1 // pred_check
      _
    $region7: #{tpu_custom_call.1} parent=1 // pred_check_branch
      %26 = sbr.rel (0) target = $region9
    $region8: #{tpu_custom_call.1} parent=1 // pred_region
      %s27 = sadd.s32 0, 0
      %29 = vsyncadd [#allocation6], 0
      %s30 = smul.addr %s27, 8
      %s31 = scalar_lea.hbm %s1, %s30
      %s32 = sshll.u32 %s31, 4
      %s33 = int_to_ptr.hbm [resolvable:$true] %s32
      %s34 = sshll.u32 [#allocation5], 4
      %s35 = int_to_ptr.vmem [resolvable:$true] %s34
      %40 = dma.hbm_to_vmem [thread:$0]  %s33, 512, %s35, [#allocation6], 128, 128, 8
    $region9: #{tpu_custom_call.1} parent=1 // pred_fallthru
      _
    // Predicated region
    $region10: #{tpu_custom_call.1} parent=1 // pred_check
      _
    $region11: #{tpu_custom_call.1} parent=1 // pred_check_branch
      %42 = sbr.rel (0) target = $region13
    $region12: #{tpu_custom_call.1} parent=1 // pred_region
      %44 = dma.done [#allocation4], 512
    $region13: #{tpu_custom_call.1} parent=1 // pred_fallthru
      _
    // Predicated region
    $region14: #{tpu_custom_call.1} parent=1 // pred_check
      _
    $region15: #{tpu_custom_call.1} parent=1 // pred_check_branch
      %46 = sbr.rel (0) target = $region17
    $region16: #{tpu_custom_call.1} parent=1 // pred_region
      %48 = dma.done [#allocation6], 512
    $region17: #{tpu_custom_call.1} parent=1 // pred_fallthru
      _
    %s49 = sadd.s32 0, 0
    %s50 = sadd.s32 0, 0
    %p51 = scmp.eq.s32.totalorder 0, 0
    // Predicated region
    $region18: #{tpu_custom_call.1} parent=1 // pred_check
      %p52 = pneg %p51
    $region19: #{tpu_custom_call.1} parent=1 // pred_check_branch
      %54 = sbr.rel (%p52) target = $region21
    $region20: #{tpu_custom_call.1} parent=1 // pred_region
      %55 = vst [vmem:[#allocation2] sm:$0xff] 0.0
      %56 = vst [vmem:[#allocation2 + $0x8] sm:$0xff] 0.0
      %57 = vst [vmem:[#allocation2 + $0x10] sm:$0xff] 0.0
      %58 = vst [vmem:[#allocation2 + $0x18] sm:$0xff] 0.0
    $region21: #{tpu_custom_call.1} parent=1 // pred_fallthru
      _
    %v59 = vld [vmem:[#allocation3] sm:$0xff]
    %v60 = vld [vmem:[#allocation3 + $0x8] sm:$0xff]
    %v61 = vld [vmem:[#allocation3 + $0x10] sm:$0xff]
    %v62 = vld [vmem:[#allocation3 + $0x18] sm:$0xff]
    %v63 = vld [vmem:[#allocation5] sm:$0xff]
    %v64 = vld [vmem:[#allocation5 + $0x8] sm:$0xff]
    %v65 = vld [vmem:[#allocation5 + $0x10] sm:$0xff]
    %v66 = vld [vmem:[#allocation5 + $0x18] sm:$0xff]
    %v67 = vmax.f32 %v59, %v60
    %v68 = vmax.f32 %v61, %v62
    %v69 = vmax.f32 %v67, %v68
    %v70 = vrot.slane %v69, 4
    %v71 = vmax.f32 %v69, %v70
    %v72 = vrot.slane %v71, 2
    %v73 = vmax.f32 %v71, %v72
    %v74 = vrot.slane %v73, 1
    %v75 = vmax.f32 %v73, %v74
    %v76 = vsub.f32 %v59, %v75
    %v77 = vsub.f32 %v60, %v75
    %v78 = vsub.f32 %v61, %v75
    %v79 = vsub.f32 %v62, %v75
    %v80 = vmul.f32 %v76, 1.442695
    %v81 = vpow.pop %v80
    %v82 = vmul.f32 %v77, 1.442695
    %v83 = vpow.pop %v82
    %v84 = vmul.f32 %v78, 1.442695
    %v85 = vpow.pop %v84
    %v86 = vmul.f32 %v79, 1.442695
    %v87 = vpow.pop %v86
    %v88 = vadd.f32 %v81, %v83
    %v89 = vadd.f32 %v88, %v85
    %v90 = vadd.f32 %v89, %v87
    %v91 = vrot.slane %v90, 4
    %v92 = vadd.f32 %v90, %v91
    %v93 = vrot.slane %v92, 2
    %v94 = vadd.f32 %v92, %v93
    %v95 = vrot.slane %v94, 1
    %v96 = vadd.f32 %v94, %v95
    %v97 = vlog2.pop %v96
    %v98 = vmul.f32 %v97, 0.6931472
    %v99 = vsub.f32 %v76, %v98
    %v100 = vsub.f32 %v77, %v98
    %v101 = vsub.f32 %v78, %v98
    %v102 = vsub.f32 %v79, %v98
    %v103 = vld [vmem:[#allocation2] sm:$0xff]
    %v104 = vld [vmem:[#allocation2 + $0x8] sm:$0xff]
    %v105 = vld [vmem:[#allocation2 + $0x10] sm:$0xff]
    %v106 = vld [vmem:[#allocation2 + $0x18] sm:$0xff]
    %v107 = vmul.f32 %v63, %v99
    %v108 = vmul.f32 %v64, %v100
    %v109 = vmul.f32 %v65, %v101
    %v110 = vmul.f32 %v66, %v102
    %v111 = vadd.f32 %v103, %v107
    %v112 = vadd.f32 %v104, %v108
    %v113 = vadd.f32 %v105, %v109
    %v114 = vadd.f32 %v106, %v110
    %115 = vst [vmem:[#allocation2] sm:$0xff] %v111
    %116 = vst [vmem:[#allocation2 + $0x8] sm:$0xff] %v112
    %117 = vst [vmem:[#allocation2 + $0x10] sm:$0xff] %v113
    %118 = vst [vmem:[#allocation2 + $0x18] sm:$0xff] %v114
    // Predicated region
    $region22: #{tpu_custom_call.1} parent=1 // pred_check
      %p119 = pneg %p51
    $region23: #{tpu_custom_call.1} parent=1 // pred_check_branch
      %121 = sbr.rel (%p119) target = $region25
    $region24: #{tpu_custom_call.1} parent=1 // pred_region
      %v122 = vld [vmem:[#allocation2] sm:$0xff]
      %v123 = vld [vmem:[#allocation2 + $0x8] sm:$0xff]
      %v124 = vld [vmem:[#allocation2 + $0x10] sm:$0xff]
      %v125 = vld [vmem:[#allocation2 + $0x18] sm:$0xff]
      %126 = vadd.xlane.f32.xlu0 %v122
      %v127 = vpop.xlane.xlu0 %126
      %128 = vadd.xlane.f32.xlu0 %v123
      %v129 = vpop.xlane.xlu0 %128
      %130 = vadd.xlane.f32.xlu0 %v124
      %v131 = vpop.xlane.xlu0 %130
      %132 = vadd.xlane.f32.xlu0 %v125
      %v133 = vpop.xlane.xlu0 %132
      %vm134 = vcmask 7168
      %135 = vst.msk [vmem:[%s2] sm:$0xff] %vm134, %v127
      %136 = vst.msk [vmem:[%s2 + $0x8] sm:$0xff] %vm134, %v129
      %137 = vst.msk [vmem:[%s2 + $0x10] sm:$0xff] %vm134, %v131
      %138 = vst.msk [vmem:[%s2 + $0x18] sm:$0xff] %vm134, %v133
    $region25: #{tpu_custom_call.1} parent=1 // pred_fallthru
      _
    // Predicated region
    $region26: #{tpu_custom_call.1} parent=1 // pred_check
      _
    $region27: #{tpu_custom_call.1} parent=1 // pred_check_branch
      %140 = sbr.rel (0) target = $region29
    $region28: #{tpu_custom_call.1} parent=1 // pred_region
      _
    $region29: #{tpu_custom_call.1} parent=1 // pred_fallthru
      _
    // Predicated region
    $region30: #{tpu_custom_call.1} parent=1 // pred_check
      _
    $region31: #{tpu_custom_call.1} parent=1 // pred_check_branch
      %142 = sbr.rel (0) target = $region33
    $region32: #{tpu_custom_call.1} parent=1 // pred_region
      _
    $region33: #{tpu_custom_call.1} parent=1 // pred_fallthru
      _
    %143 = vsyncpa [#allocation4], 1
    %144 = vsyncpa [#allocation6], 1

</llo_original>
